<compile_context>
chip_gen: v6e
topology: v6e:2x2x1
jax: 0.10.0
libtpu: 0.0.40
codegen_flags: <defaults>
</compile_context>

<pallas_src>
import functools

import jax
import jax.numpy as jnp
from jax import lax
from jax.experimental import pallas as pl
from jax.experimental.pallas import tpu as pltpu


def _cdiv(a, b):
    return -(-a // b)


def _round_up(x, m):
    return _cdiv(x, m) * m


def _l2_partial_kernel(feat_ref, cent_ref, out_ref, *, sub, shared, unroll):
    """One (row-tile, lane-tile) block -> (sub, tile_l) f32 partial sum of sq diffs."""
    tb, tl = feat_ref.shape
    groups = tb // sub

    if shared:
        # Tiny resident batch-shared centroid block; hoisted out of the loop.
        c32 = cent_ref[...].astype(jnp.float32)                 # (sub, tl)

    def body(g, acc):
        r = pl.multiple_of(g * sub, sub)
        f = feat_ref[pl.ds(r, sub), :].astype(jnp.float32)      # (sub, tl)
        if shared:
            d = f - c32
        else:
            d = f - cent_ref[pl.ds(r, sub), :].astype(jnp.float32)
        return acc + d * d

    acc = lax.fori_loop(0, groups, body,
                        jnp.zeros((sub, tl), jnp.float32), unroll=unroll)
    out_ref[...] = acc


def l2_distance(feature: jax.Array, centroid: jax.Array) -> jax.Array:
    """Pallas equivalent of L2Distance.forward for 2-D feature [B, D]."""
    feature = jnp.asarray(feature)
    centroid = jnp.asarray(centroid)
    assert feature.ndim == 2, "L2Distance kernel expects feature of shape [B, D]"
    B, D = feature.shape

    # Is the centroid shared across the batch (the common case)?
    batch_shared = centroid.ndim < 2 or centroid.shape[0] == 1
    cdt = jnp.promote_types(feature.dtype, centroid.dtype)
    centroid = centroid.astype(cdt)                  # tiny; matches torch promotion

    f_item = feature.dtype.itemsize
    c_item = jnp.dtype(cdt).itemsize
    sub = max(8, 32 // f_item)                       # dtype-native sublane count

    # ---- lane-dense packing --------------------------------------------------
    if D % 128 == 0:
        L, k = D, 1
    elif 128 % D == 0:
        L, k = 128, 128 // D                         # pack k samples per 128-lane row
    else:
        L, k = _round_up(D, 128), 1                  # zero-pad the feature dim

    def pack(x):                                     # [R, D] -> [rows, L], zero padded
        R = x.shape[0]
        if k > 1:
            rc = _round_up(R, k)
            if rc != R:
                x = jnp.pad(x, ((0, rc - R), (0, 0)))
            return x.reshape(rc * D // L, L)
        if L != D:
            x = jnp.pad(x, ((0, 0), (0, L - D)))
        return x

    feat2d = pack(feature)                           # (rows0, L), original dtype
    rows0 = feat2d.shape[0]

    # ---- lane tiling (handles very wide D, bounds the f32 accumulator) -------
    tl_cap = max(128, ((8192 // sub) // 128) * 128)  # acc <= 32 KiB (8 vregs)
    grid_l = _cdiv(L, tl_cap)
    tl = _round_up(_cdiv(L, grid_l), 128)
    L_pad = grid_l * tl
    if L_pad != L:
        feat2d = jnp.pad(feat2d, ((0, 0), (0, L_pad - L)))

    # ---- row-tile sizing: large VMEM-budget tiles ----------------------------
    budget = 24 * 1024 * 1024                        # double-buffered input bytes (v7x-safe)
    row_bytes = tl * f_item + (0 if batch_shared else tl * c_item)
    tb_max = max(sub, (budget // (2 * row_bytes)) // sub * sub)

    grid_r = max(1, _cdiv(rows0, tb_max))
    # Megacore: give v7x's two TensorCores something to split whenever the work
    # is big enough that an extra ~0.35us grid step is noise on 1-TC chips.
    big_enough = rows0 * tl * f_item >= (4 << 20)
    if grid_l == 1 and grid_r == 1 and big_enough and rows0 >= 2 * sub:
        grid_r = 2
    if grid_l == 1 and grid_r > 1 and grid_r % 2 == 1:
        grid_r += 1                                  # balanced split across 2 TCs
    tb = _round_up(_cdiv(rows0, grid_r), sub)
    if tb >= 8 * sub:                                # groups divisible by the unroll
        tb = _round_up(tb, 8 * sub)
        unroll = 8
    else:
        unroll = True
    rows_pad = grid_r * tb
    if rows_pad != rows0:
        feat2d = jnp.pad(feat2d, ((0, rows_pad - rows0), (0, 0)))

    # ---- centroid operand ----------------------------------------------------
    if batch_shared:
        crow = jnp.broadcast_to(centroid.reshape(1, -1), (1, D))
        if k > 1:
            crow = jnp.tile(crow, (1, k))                        # (1, 128)
        elif L != D:
            crow = jnp.pad(crow, ((0, 0), (0, L - D)))           # (1, L)
        if L_pad != L:
            crow = jnp.pad(crow, ((0, 0), (0, L_pad - L)))
        cent_in = jnp.broadcast_to(crow, (sub, L_pad))           # tiny resident block
        cent_spec = pl.BlockSpec((sub, tl), lambda i, j: (0, j))
    else:
        cent_in = pack(jnp.broadcast_to(centroid, (B, D)))
        if L_pad != L:
            cent_in = jnp.pad(cent_in, ((0, 0), (0, L_pad - L)))
        if rows_pad != rows0:
            cent_in = jnp.pad(cent_in, ((0, rows_pad - rows0), (0, 0)))
        cent_spec = pl.BlockSpec((tb, tl), lambda i, j: (i, j))

    kernel = functools.partial(_l2_partial_kernel, sub=sub,
                               shared=batch_shared, unroll=unroll)

    out_rows, out_cols = grid_r * sub, grid_l * tl

    # ---- VMEM limit / cost estimate from the actual buffer math --------------
    vmem_need = (2 * tb * tl * f_item                            # feature (dbl-buffered)
                 + 2 * (sub if batch_shared else tb) * tl * c_item
                 + 2 * sub * tl * 4                              # output block
                 + 2 * sub * tl * 4)                             # in-kernel f32 temporaries
    vmem_limit = min(max(int(1.25 * vmem_need) + (2 << 20), 16 << 20), 64 << 20)

    cost = pl.CostEstimate(
        flops=3 * rows_pad * L_pad,
        transcendentals=0,
        bytes_accessed=(feat2d.size * f_item + cent_in.size * c_item
                        + out_rows * out_cols * 4),
    )

    # NOTE: at these tile sizes the default 2-deep pipeline hides DMA; deeper
    # buffering (pl.Buffered(3)) is only worth trying on 128 MiB-VMEM parts.
    partials = pl.pallas_call(
        kernel,
        out_shape=jax.ShapeDtypeStruct((out_rows, out_cols), jnp.float32),
        grid_spec=pltpu.PrefetchScalarGridSpec(
            num_scalar_prefetch=0,
            grid=(grid_r, grid_l),
            in_specs=[
                pl.BlockSpec((tb, tl), lambda i, j: (i, j)),
                cent_spec,
            ],
            out_specs=pl.BlockSpec((sub, tl), lambda i, j: (i, j)),
        ),
        compiler_params=pltpu.CompilerParams(
            dimension_semantics=("parallel", "parallel"),
            vmem_limit_bytes=vmem_limit,
        ),
        cost_estimate=cost,
    )(feat2d, cent_in)

    # ---- tiny JAX epilogue ---------------------------------------------------
    total = jnp.sum(partials, dtype=jnp.float32)
    if batch_shared:
        # Padded sample slots are zero-feature rows minus the broadcast
        # centroid; subtract their analytically known contribution instead of
        # masking in-kernel.
        n_pad_slots = rows_pad * k - B
        if n_pad_slots:
            cvec = jnp.broadcast_to(centroid.reshape(1, -1), (1, D)).astype(jnp.float32)
            total = total - jnp.float32(n_pad_slots) * jnp.sum(cvec * cvec)
    # Streamed per-sample centroid: padded slots are (0 - 0)^2, already exact.
    return (total / jnp.float32(B)).astype(jnp.float32)


def _reference(feature, centroid):
    d = (feature - centroid) ** 2
    d = jnp.sum(d, axis=1)
    return jnp.mean(d, axis=0)


if __name__ == "__main__":
    key = jax.random.PRNGKey(0)
    k1, k2, k3, k4, k5, k6, k7 = jax.random.split(key, 7)

    # Primary case (matches the module's typical use): shared [1, D] centroid.
    B, D = 8, 32
    feature = jax.random.normal(k1, (B, D), dtype=jnp.float32)
    centroid = jax.random.normal(k2, (1, D), dtype=jnp.float32)
    out = jax.block_until_ready(l2_distance(feature, centroid))
    ref = _reference(feature, centroid)
    assert jnp.allclose(out, ref, rtol=1e-4, atol=1e-4), (out, ref)

    # Padded-D + padded-rows path (exercises the epilogue padding correction).
    f2 = jax.random.normal(k3, (10, 200), dtype=jnp.float32)
    c2 = jax.random.normal(k4, (200,), dtype=jnp.float32)
    out2 = jax.block_until_ready(l2_distance(f2, c2))
    ref2 = _reference(f2, c2)
    assert jnp.allclose(out2, ref2, rtol=1e-4, atol=1e-4), (out2, ref2)

    # Full per-sample centroid (streamed second operand path, no correction).
    c3 = jax.random.normal(k5, (B, D), dtype=jnp.float32)
    out3 = jax.block_until_ready(l2_distance(feature, c3))
    ref3 = _reference(feature, c3)
    assert jnp.allclose(out3, ref3, rtol=1e-4, atol=1e-4), (out3, ref3)

    # Multi-group inner loop (unroll=8 path) with row padding + correction.
    f4 = jax.random.normal(k6, (600, 128), dtype=jnp.float32)
    c4 = jax.random.normal(k7, (128,), dtype=jnp.float32)
    out4 = jax.block_until_ready(l2_distance(f4, c4))
    ref4 = _reference(f4, c4)
    assert jnp.allclose(out4, ref4, rtol=1e-4, atol=1e-4), (out4, ref4)

    print("KERNEL_OK")
</pallas_src>

<mosaic_0001>
module attributes {stable_mosaic.version = 11 : i64} {
  func.func @_l2_partial_kernel(%arg0: i32, %arg1: i32, %arg2: memref<8x128xf32, #tpu.memory_space<vmem>>, %arg3: memref<8x128xf32, #tpu.memory_space<vmem>>, %arg4: memref<8x128xf32, #tpu.memory_space<vmem>>) attributes {dimension_semantics = [#tpu.dimension_semantics<parallel>, #tpu.dimension_semantics<parallel>], iteration_bounds = array<i64: 1, 1>, scalar_prefetch = 0 : i64, scratch_operands = 0 : i64, tpu.core_type = #tpu.core_type<tc>, window_params = [{transform_indices = @transform_0, window_bounds = array<i64: 8, 128>}, {transform_indices = @transform_1, window_bounds = array<i64: 8, 128>}, {transform_indices = @transform_2, window_bounds = array<i64: 8, 128>}]} {
    %c0 = arith.constant 0 : index
    %c0_0 = arith.constant 0 : index
    %0 = vector.load %arg3[%c0, %c0_0] : memref<8x128xf32, #tpu.memory_space<vmem>>, vector<8x128xf32>
    %cst = arith.constant 0.000000e+00 : f32
    %1 = vector.broadcast %cst : f32 to vector<8x128xf32>
    %c0_i32 = arith.constant 0 : i32
    %c8_i32 = arith.constant 8 : i32
    %2 = arith.muli %c0_i32, %c8_i32 : i32
    %3 = tpu.assume_multiple %2, 8 : i32
    %4 = arith.index_cast %3 : i32 to index
    %c0_1 = arith.constant 0 : index
    %5 = vector.load %arg2[%4, %c0_1] : memref<8x128xf32, #tpu.memory_space<vmem>>, vector<8x128xf32>
    %6 = arith.subf %5, %0 : vector<8x128xf32>
    %7 = arith.mulf %6, %6 : vector<8x128xf32>
    %8 = arith.addf %1, %7 : vector<8x128xf32>
    %c1_i32 = arith.constant 1 : i32
    %c0_2 = arith.constant 0 : index
    %c0_3 = arith.constant 0 : index
    %9 = vector.load %arg4[%c0_2, %c0_3] : memref<8x128xf32, #tpu.memory_space<vmem>>, vector<8x128xf32>
    tpu.vector_store %arg4[%c0_2, %c0_3], %8 {strides = array<i32>} : memref<8x128xf32, #tpu.memory_space<vmem>>, vector<8x128xf32>,
    return
  }
  func.func @transform_0(%arg0: i32, %arg1: i32) -> (i32, i32) {
    %c0_i32 = arith.constant 0 : i32
    return %arg0, %arg1 : i32, i32
  }
  func.func @transform_1(%arg0: i32, %arg1: i32) -> (i32, i32) {
    %c0_i32 = arith.constant 0 : i32
    %c0_i32_0 = arith.constant 0 : i32
    return %c0_i32, %arg1 : i32, i32
  }
  func.func @transform_2(%arg0: i32, %arg1: i32) -> (i32, i32) {
    %c0_i32 = arith.constant 0 : i32
    return %arg0, %arg1 : i32, i32
  }
}

</mosaic_0001>

<llo_original>
// kernel: tpu_custom_call.1
$region0: #{tpu_custom_call.1}
  #allocation0 [shape = 'u32[]', space=smem, size = 0x4, offset = 0x4, fixed_abs, tag = 'smem constant byte address 0x4 - core index']
  #allocation1 [shape = 'u32[144,128]{1,0:T(1,128)}', space=vmem, size = 0x12000, scoped, tag = 'internal scratch']
  %s0 = inlined_call_operand.hbm [shape: f32[8,128], index: 0, kind: input, shape index: {}]
  %s1 = inlined_call_operand.hbm [shape: f32[8,128], index: 1, kind: input, shape index: {}]
  %s2 = inlined_call_operand.hbm [shape: f32[8,128], index: 2, kind: output, shape index: {}]
  %s3 = sld [smem:[#allocation0]]
  $region26: #{tpu_custom_call.1} parent=0
    _
  %s5 = ssub.s32 1, %s3
  %s6 = scalar_select 0, %s5, %s3
  $region1: #{tpu_custom_call.1} parent=0
    #allocation2 [shape = 'u8[4096]{0}', space=vmem, size = 0x1000, scoped, tag = 'input window, operand 0, single buffered']
    #allocation3 [shape = 's32[1]{0}', space=sflag, size = 0x4, scoped, tag = 'scoped memory for tpu_custom_call.1']
    #allocation4 [shape = 's32[1]{0}', space=sflag, size = 0x4, scoped, tag = 'scoped memory for tpu_custom_call.1']
    #allocation5 [shape = 'u8[4096]{0}', space=vmem, size = 0x1000, scoped, tag = 'input window, operand 1, single buffered']
    #allocation6 [shape = 's32[1]{0}', space=sflag, size = 0x4, scoped, tag = 'scoped memory for tpu_custom_call.1']
    #allocation7 [shape = 'u8[4096]{0}', space=vmem, size = 0x1000, scoped, tag = 'output window, operand 0, single buffered']
    %7 = vsyncpa [#allocation3], 0
    %8 = vsyncpa [#allocation6], 0
    %9 = vsyncpa [#allocation4], 0
    // Predicated region
    $region2: #{tpu_custom_call.1} parent=1 // pred_check
      _
    $region3: #{tpu_custom_call.1} parent=1 // pred_check_branch
      %11 = sbr.rel (0) target = $region5
    $region4: #{tpu_custom_call.1} parent=1 // pred_region
      %s13 = ssub.s32 128, 128
      %14 = vsyncadd [#allocation3], %s13
      %s16 = sshll.u32 [#allocation2], 4
      %s17 = int_to_ptr.vmem [resolvable:$true] %s16
      %19 = dma.hbm_to_vmem [thread:$0]  %s0, 128, %s17, [#allocation3]
    $region5: #{tpu_custom_call.1} parent=1 // pred_fallthru
      _
    // Predicated region
    $region6: #{tpu_custom_call.1} parent=1 // pred_check
      _
    $region7: #{tpu_custom_call.1} parent=1 // pred_check_branch
      %21 = sbr.rel (0) target = $region9
    $region8: #{tpu_custom_call.1} parent=1 // pred_region
      %s23 = ssub.s32 128, 128
      %24 = vsyncadd [#allocation6], %s23
      %s26 = sshll.u32 [#allocation5], 4
      %s27 = int_to_ptr.vmem [resolvable:$true] %s26
      %29 = dma.hbm_to_vmem [thread:$0]  %s1, 128, %s27, [#allocation6]
    $region9: #{tpu_custom_call.1} parent=1 // pred_fallthru
      _
    // Predicated region
    $region10: #{tpu_custom_call.1} parent=1 // pred_check
      _
    $region11: #{tpu_custom_call.1} parent=1 // pred_check_branch
      %31 = sbr.rel (0) target = $region13
    $region12: #{tpu_custom_call.1} parent=1 // pred_region
      %32 = dma.done [#allocation3], 128
    $region13: #{tpu_custom_call.1} parent=1 // pred_fallthru
      _
    // Predicated region
    $region14: #{tpu_custom_call.1} parent=1 // pred_check
      _
    $region15: #{tpu_custom_call.1} parent=1 // pred_check_branch
      %34 = sbr.rel (0) target = $region17
    $region16: #{tpu_custom_call.1} parent=1 // pred_region
      %35 = dma.done [#allocation6], 128
    $region17: #{tpu_custom_call.1} parent=1 // pred_fallthru
      _
    %v36 = vld [vmem:[#allocation5] sm:$0xff]
    %v37 = vld [vmem:[#allocation2] sm:$0xff]
    %v38 = vsub.f32 %v37, %v36
    %v39 = vmul.f32 %v38, %v38
    %v40 = vadd.f32 %v39, 0.0
    %41 = vst [vmem:[#allocation7] sm:$0xff] %v40
    // Predicated region
    $region18: #{tpu_custom_call.1} parent=1 // pred_check
      _
    $region19: #{tpu_custom_call.1} parent=1 // pred_check_branch
      %43 = sbr.rel (0) target = $region21
    $region20: #{tpu_custom_call.1} parent=1 // pred_region
      %s45 = ssub.s32 128, 128
      %46 = vsyncadd [#allocation4], %s45
      %s48 = sshll.u32 [#allocation7], 4
      %s49 = int_to_ptr.vmem [resolvable:$true] %s48
      %51 = dma.vmem_to_hbm [thread:$0]  %s49, 128, %s2, [#allocation4]
    $region21: #{tpu_custom_call.1} parent=1 // pred_fallthru
      _
    // Predicated region
    $region22: #{tpu_custom_call.1} parent=1 // pred_check
      _
    $region23: #{tpu_custom_call.1} parent=1 // pred_check_branch
      %53 = sbr.rel (0) target = $region25
    $region24: #{tpu_custom_call.1} parent=1 // pred_region
      %54 = dma.done [#allocation4], 128
    $region25: #{tpu_custom_call.1} parent=1 // pred_fallthru
      _
    %55 = vsyncpa [#allocation3], 1
    %56 = vsyncpa [#allocation6], 1
    %57 = vsyncpa [#allocation4], 1

</llo_original>
